<compile_context>
chip_gen: v7x
topology: tpu7x:2x2x1
jax: 0.10.0
libtpu: 0.0.40
codegen_flags: <defaults>
</compile_context>

<pallas_src>
import functools
import math

import jax
import jax.numpy as jnp
from jax import lax
from jax.experimental import pallas as pl
from jax.experimental.pallas import tpu as pltpu


# ----------------------------------------------------------------------------
# In-kernel helpers
# ----------------------------------------------------------------------------
def _mxu_dot(a, b):
    """bf16 MXU matmul with f32 accumulation."""
    return jnp.dot(a.astype(jnp.bfloat16), b.astype(jnp.bfloat16),
                   preferred_element_type=jnp.float32)


def _mxu_dot_nt(a, b):
    """a @ b.T (contract minor dims), bf16 operands, f32 accumulation."""
    return lax.dot_general(a.astype(jnp.bfloat16), b.astype(jnp.bfloat16),
                           (((1,), (1,)), ((), ())),
                           preferred_element_type=jnp.float32)


def _gelu(x):
    # TODO(synk): torch nn.GELU default is exact erf; tanh approximation used
    # here for robust Mosaic lowering (tiny numerical difference).
    return jax.nn.gelu(x, approximate=True)


def _ln(x, g, b, eps=1e-6):
    mu = jnp.mean(x, axis=-1, keepdims=True)
    var = jnp.mean((x - mu) ** 2, axis=-1, keepdims=True)
    return (x - mu) * lax.rsqrt(var + eps) * g + b


# ----------------------------------------------------------------------------
# Kernel 1: per-marker projections (no bias) + GELU + concat + fused projector
# ----------------------------------------------------------------------------
def _fused_proj_kernel(x_ref, pw_ref, fw_ref, fb_ref, o_ref, *, num_markers):
    parts = []
    for m in range(num_markers):                       # static loop, M small
        parts.append(_gelu(_mxu_dot(x_ref[m], pw_ref[m])))   # (B*N, D)
    cat = jnp.concatenate(parts, axis=-1)              # (B*N, M*D) lane-dense
    y = _mxu_dot(cat, fw_ref[...]) + fb_ref[...]
    o_ref[...] = y.astype(o_ref.dtype)


def pallas_fused_projection(x_stack, pw_stack, fused_w, fused_b):
    M, BN, P = x_stack.shape
    D = fused_w.shape[1]
    return pl.pallas_call(
        functools.partial(_fused_proj_kernel, num_markers=M),
        out_shape=jax.ShapeDtypeStruct((BN, D), jnp.float32),
        grid=(1,),
        in_specs=[
            pl.BlockSpec((M, BN, P), lambda i: (0, 0, 0)),
            pl.BlockSpec((M, P, D), lambda i: (0, 0, 0)),
            pl.BlockSpec((M * D, D), lambda i: (0, 0)),
            pl.BlockSpec((1, D), lambda i: (0, 0)),
        ],
        out_specs=pl.BlockSpec((BN, D), lambda i: (0, 0)),
    )(x_stack, pw_stack, fused_w, fused_b.reshape(1, D))


# ----------------------------------------------------------------------------
# Kernel 2: per-batch GCN + pool linear + softmax + dense min-cut products
# ----------------------------------------------------------------------------
def _gcn_pool_mincut_kernel(x_ref, adj_ref, m_ref, gw_ref, gb_ref, pw_ref, pb_ref,
                            out_ref, oadj_ref, ss_ref, den_ref):
    m = m_ref[...]                                     # (N, 1)
    adj = adj_ref[...]                                 # (N, N)
    xm = x_ref[...] * m                                # X = mask * node_feat
    # TODO(synk): GCNBlock internals were not provided; approximated as a single
    # GCN layer relu(adj @ (mask*X) @ W + b).
    h = _mxu_dot(adj, xm)
    h = _mxu_dot(h, gw_ref[...]) + gb_ref[...]
    xg = jnp.maximum(h, 0.0)                           # (N, D)

    # pool assignments: softmax(xg @ Wp + bp)
    sl = _mxu_dot(xg, pw_ref[...]) + pb_ref[...]       # (N, K)
    smax = jnp.max(sl, axis=-1, keepdims=True)
    e = jnp.exp(sl - smax)
    s = e / jnp.sum(e, axis=-1, keepdims=True)

    # dense min-cut products with masked x and s; transpose s once, reuse.
    x_m = xg * m
    s_m = s * m
    st = jnp.transpose(s_m)                            # (K, N), single XLU xpose
    out_ref[...] = jnp.dot(st, x_m, preferred_element_type=jnp.float32)
    st_a = jnp.dot(st, adj, preferred_element_type=jnp.float32)
    oadj_ref[...] = jnp.dot(st_a, s_m, preferred_element_type=jnp.float32)
    ss_ref[...] = jnp.dot(st, s_m, preferred_element_type=jnp.float32)

    # mincut denominator: trace(s^T diag(adj.sum(-1)) s) = sum(d * s^2)
    d = jnp.sum(adj, axis=-1, keepdims=True)           # (N, 1)
    w = d * s_m * s_m                                  # (N, K)
    den_ref[...] = jnp.sum(jnp.sum(w, axis=1, keepdims=True), axis=0,
                           keepdims=True)              # (1, 1)


def pallas_gcn_pool_mincut(X, adj, mask3, gcn_w, gcn_b, pool_w, pool_b):
    B, N, D = X.shape
    K = pool_w.shape[1]
    return pl.pallas_call(
        _gcn_pool_mincut_kernel,
        out_shape=(
            jax.ShapeDtypeStruct((B, K, D), jnp.float32),
            jax.ShapeDtypeStruct((B, K, K), jnp.float32),
            jax.ShapeDtypeStruct((B, K, K), jnp.float32),
            jax.ShapeDtypeStruct((B, 1, 1), jnp.float32),
        ),
        grid=(B,),
        in_specs=[
            pl.BlockSpec((None, N, D), lambda i: (i, 0, 0)),
            pl.BlockSpec((None, N, N), lambda i: (i, 0, 0)),
            pl.BlockSpec((None, N, 1), lambda i: (i, 0, 0)),
            pl.BlockSpec((D, D), lambda i: (0, 0)),
            pl.BlockSpec((1, D), lambda i: (0, 0)),
            pl.BlockSpec((D, K), lambda i: (0, 0)),
            pl.BlockSpec((1, K), lambda i: (0, 0)),
        ],
        out_specs=(
            pl.BlockSpec((None, K, D), lambda i: (i, 0, 0)),
            pl.BlockSpec((None, K, K), lambda i: (i, 0, 0)),
            pl.BlockSpec((None, K, K), lambda i: (i, 0, 0)),
            pl.BlockSpec((None, 1, 1), lambda i: (i, 0, 0)),
        ),
        compiler_params=pltpu.CompilerParams(dimension_semantics=("parallel",)),
    )(X, adj, mask3, gcn_w, gcn_b.reshape(1, D), pool_w, pool_b.reshape(1, K))


# ----------------------------------------------------------------------------
# Kernel 3: one fully-fused ViT encoder block per batch element
# ----------------------------------------------------------------------------
def _vit_block_kernel(x_ref, ln1g_ref, ln1b_ref, qkvw_ref, qkvb_ref,
                      projw_ref, projb_ref, ln2g_ref, ln2b_ref,
                      fc1w_ref, fc1b_ref, fc2w_ref, fc2b_ref, o_ref,
                      *, num_heads, s_valid):
    x = x_ref[...]                                     # (S_pad, D) f32
    S, D = x.shape
    hd = D // num_heads
    scale = 1.0 / math.sqrt(hd)

    # --- attention sub-block ---
    h = _ln(x, ln1g_ref[...], ln1b_ref[...])
    qkv = _mxu_dot(h, qkvw_ref[...]) + qkvb_ref[...]   # (S, 3D)
    q = qkv[:, :D] * scale                             # fold 1/sqrt(hd) into q
    k = qkv[:, D:2 * D]
    v = qkv[:, 2 * D:]

    # mask out padded key positions (>= s_valid)
    col = lax.broadcasted_iota(jnp.int32, (S, S), 1)
    neg = jnp.where(col < s_valid, 0.0, -1e30).astype(jnp.float32)

    heads = []
    for hh in range(num_heads):                        # static loop over heads
        lo = hh * hd
        qh = q[:, lo:lo + hd]
        kh = k[:, lo:lo + hd]
        vh = v[:, lo:lo + hd]
        sc = _mxu_dot_nt(qh, kh) + neg                 # (S, S)
        mx = jnp.max(sc, axis=-1, keepdims=True)
        p = jnp.exp(sc - mx)
        p = p * pl.reciprocal(jnp.sum(p, axis=-1, keepdims=True), approx=True)
        heads.append(_mxu_dot(p, vh))                  # (S, hd)
    attn = jnp.concatenate(heads, axis=-1)             # (S, D)
    attn = _mxu_dot(attn, projw_ref[...]) + projb_ref[...]
    x = x + attn

    # --- MLP sub-block ---
    h = _ln(x, ln2g_ref[...], ln2b_ref[...])
    h = _gelu(_mxu_dot(h, fc1w_ref[...]) + fc1b_ref[...])
    h = _mxu_dot(h, fc2w_ref[...]) + fc2b_ref[...]
    o_ref[...] = (x + h).astype(o_ref.dtype)


def pallas_vit_block(x, blk, *, num_heads, s_valid):
    B, S, D = x.shape
    HID = blk["fc1_w"].shape[1]

    def full2(shape):
        return pl.BlockSpec(shape, lambda b: (0, 0))

    return pl.pallas_call(
        functools.partial(_vit_block_kernel, num_heads=num_heads, s_valid=s_valid),
        out_shape=jax.ShapeDtypeStruct((B, S, D), jnp.float32),
        grid=(B,),
        in_specs=[
            pl.BlockSpec((None, S, D), lambda b: (b, 0, 0)),
            full2((1, D)), full2((1, D)),
            full2((D, 3 * D)), full2((1, 3 * D)),
            full2((D, D)), full2((1, D)),
            full2((1, D)), full2((1, D)),
            full2((D, HID)), full2((1, HID)),
            full2((HID, D)), full2((1, D)),
        ],
        out_specs=pl.BlockSpec((None, S, D), lambda b: (b, 0, 0)),
        compiler_params=pltpu.CompilerParams(dimension_semantics=("parallel",)),
    )(x,
      blk["ln1_g"].reshape(1, D), blk["ln1_b"].reshape(1, D),
      blk["qkv_w"], blk["qkv_b"].reshape(1, 3 * D),
      blk["proj_w"], blk["proj_b"].reshape(1, D),
      blk["ln2_g"].reshape(1, D), blk["ln2_b"].reshape(1, D),
      blk["fc1_w"], blk["fc1_b"].reshape(1, HID),
      blk["fc2_w"], blk["fc2_b"].reshape(1, D))


# ----------------------------------------------------------------------------
# Kernel 4: stacked per-task MLP heads (fc1 + GELU + fc2), grid over tasks
# ----------------------------------------------------------------------------
def _heads_kernel(emb_ref, w1_ref, b1_ref, w2_ref, b2_ref, o_ref):
    h = _gelu(_mxu_dot(emb_ref[...], w1_ref[...]) + b1_ref[...])
    o_ref[...] = (_mxu_dot(h, w2_ref[...]) + b2_ref[...]).astype(o_ref.dtype)


def pallas_heads(emb, fc1_w, fc1_b, fc2_w, fc2_b):
    T, D, HID = fc1_w.shape
    C = fc2_w.shape[-1]
    B = emb.shape[0]
    out = pl.pallas_call(
        _heads_kernel,
        out_shape=jax.ShapeDtypeStruct((T, B, C), jnp.float32),
        grid=(T,),
        in_specs=[
            pl.BlockSpec((B, D), lambda t: (0, 0)),
            pl.BlockSpec((None, D, HID), lambda t: (t, 0, 0)),
            pl.BlockSpec((None, 1, HID), lambda t: (t, 0, 0)),
            pl.BlockSpec((None, HID, C), lambda t: (t, 0, 0)),
            pl.BlockSpec((None, 1, C), lambda t: (t, 0, 0)),
        ],
        out_specs=pl.BlockSpec((None, B, C), lambda t: (t, 0, 0)),
        compiler_params=pltpu.CompilerParams(dimension_semantics=("parallel",)),
    )(emb, fc1_w, fc1_b, fc2_w, fc2_b)
    return [out[t] for t in range(T)]


# ----------------------------------------------------------------------------
# JAX glue: final layernorm, losses, full forward
# ----------------------------------------------------------------------------
def layer_norm(x, g, b, eps=1e-6):
    mu = jnp.mean(x, axis=-1, keepdims=True)
    var = jnp.mean((x - mu) ** 2, axis=-1, keepdims=True)
    return (x - mu) / jnp.sqrt(var + eps) * g + b


def graph_transformer_forward(params, X, adj, mask, *, num_heads):
    B, N, D = X.shape
    K = params["pool_w"].shape[1]
    mask3 = mask.reshape(B, N, 1).astype(jnp.float32)

    out, out_adj, ss, den = pallas_gcn_pool_mincut(
        X, adj, mask3, params["gcn_w"], params["gcn_b"],
        params["pool_w"], params["pool_b"])

    # dense_mincut_pool losses (eps guards against fully-masked / zero-degree
    # batch elements producing NaN/Inf).
    eps = 1e-10
    mincut_num = jnp.trace(out_adj, axis1=1, axis2=2)            # (B,)
    mc_loss = jnp.mean(-(mincut_num / (den[:, 0, 0] + eps)))
    i_s = jnp.eye(K, dtype=jnp.float32)
    ss_norm = jnp.linalg.norm(ss, axis=(-1, -2), keepdims=True)
    ortho = jnp.linalg.norm(ss / (ss_norm + eps) - i_s / jnp.sqrt(float(K)),
                            axis=(-1, -2))
    ortho_loss = jnp.mean(ortho)
    # (the normalized coarsened adjacency returned by dense_mincut_pool is not
    #  used downstream in GraphTransformer.forward, so it is not materialized)

    # CLS token + pad sequence K+1 -> next sublane multiple (padded keys are
    # masked inside the attention kernel).
    cls = jnp.tile(params["cls_token"], (B, 1, 1))
    Xt = jnp.concatenate([cls, out], axis=1)                     # (B, K+1, D)
    s_valid = K + 1
    s_pad = max(8, ((s_valid + 7) // 8) * 8)
    Xt = jnp.pad(Xt, ((0, 0), (0, s_pad - s_valid), (0, 0)))

    # TODO(synk): VisionTransformer internals were not provided; approximated as
    # a standard pre-norm ViT encoder returning the CLS-token embedding.
    x = Xt
    for blk in params["blocks"]:
        x = pallas_vit_block(x, blk, num_heads=num_heads, s_valid=s_valid)
    x = layer_norm(x, params["norm_g"], params["norm_b"])
    emb = x[:, 0]                                                # (B, D)

    # per-task MLP heads (fusion_type != 'late')
    outs = pallas_heads(emb, params["head_fc1_w"], params["head_fc1_b"],
                        params["head_fc2_w"], params["head_fc2_b"])
    return outs, mc_loss, ortho_loss


def early_fusion_forward(params, node_feat, adj, mask, missing_markers_index,
                         *, num_heads):
    B, N, P = node_feat[0].shape

    # per-marker projection + GELU + concat + fused projector in one kernel
    x_stack = jnp.stack([nf.reshape(B * N, P) for nf in node_feat], axis=0)
    node_feats = pallas_fused_projection(
        x_stack, params["node_proj_w"], params["fused_w"], params["fused_b"]
    ).reshape(B, N, -1)

    # pick adj/mask of the first present (non-zero) marker per batch element
    # TODO(synk): like the torch reference, assumes every row of
    # missing_markers_index has >=1 nonzero entry (argmax falls back to 0).
    adj_stack = jnp.stack(adj, axis=0)                           # (M, B, N, N)
    mask_stack = jnp.stack(mask, axis=0)                         # (M, B, N)
    nz_idx = jnp.argmax(missing_markers_index != 0, axis=1)
    batch_ids = jnp.arange(B)
    adjs_ = adj_stack[nz_idx, batch_ids]                         # (B, N, N)
    masks_ = mask_stack[nz_idx, batch_ids]                       # (B, N)

    return graph_transformer_forward(params, node_feats, adjs_, masks_,
                                     num_heads=num_heads)


# ----------------------------------------------------------------------------
# Deterministic parameter init (synthetic; shapes follow the module __init__)
# ----------------------------------------------------------------------------
def init_params(key, *, P, D, M, K, HID, C, T, DEPTH):
    def nrm(k, shape):
        return 0.02 * jax.random.normal(k, shape, jnp.float32)

    keys = iter(jax.random.split(key, 256))
    p = {}
    p["node_proj_w"] = jnp.stack([nrm(next(keys), (P, D)) for _ in range(M)])  # (M,P,D)
    p["fused_w"] = nrm(next(keys), (M * D, D))
    p["fused_b"] = jnp.zeros((D,), jnp.float32)
    p["gcn_w"] = nrm(next(keys), (D, D))
    p["gcn_b"] = jnp.zeros((D,), jnp.float32)
    p["pool_w"] = nrm(next(keys), (D, K))
    p["pool_b"] = jnp.zeros((K,), jnp.float32)
    p["cls_token"] = nrm(next(keys), (1, 1, D))
    blocks = []
    for _ in range(DEPTH):
        blocks.append(dict(
            ln1_g=jnp.ones((D,), jnp.float32), ln1_b=jnp.zeros((D,), jnp.float32),
            qkv_w=nrm(next(keys), (D, 3 * D)), qkv_b=jnp.zeros((3 * D,), jnp.float32),
            proj_w=nrm(next(keys), (D, D)), proj_b=jnp.zeros((D,), jnp.float32),
            ln2_g=jnp.ones((D,), jnp.float32), ln2_b=jnp.zeros((D,), jnp.float32),
            fc1_w=nrm(next(keys), (D, HID)), fc1_b=jnp.zeros((HID,), jnp.float32),
            fc2_w=nrm(next(keys), (HID, D)), fc2_b=jnp.zeros((D,), jnp.float32),
        ))
    p["blocks"] = blocks
    p["norm_g"] = jnp.ones((D,), jnp.float32)
    p["norm_b"] = jnp.zeros((D,), jnp.float32)
    p["head_fc1_w"] = jnp.stack([nrm(next(keys), (D, HID)) for _ in range(T)])  # (T,D,HID)
    p["head_fc1_b"] = jnp.zeros((T, 1, HID), jnp.float32)
    p["head_fc2_w"] = jnp.stack([nrm(next(keys), (HID, C)) for _ in range(T)])  # (T,HID,C)
    p["head_fc2_b"] = jnp.zeros((T, 1, C), jnp.float32)
    return p


# ----------------------------------------------------------------------------
if __name__ == "__main__":
    # small, module-consistent shapes
    B, N = 2, 16            # batch, graph nodes
    P = 64                  # patch_feats_dim
    D = 32                  # embed_dim
    M = 2                   # num_markers
    K = 8                   # num_node_cluster
    C = 3                   # num_classes
    T = 2                   # num_tasks
    MLP_RATIO = 2.0
    HID = int(D * MLP_RATIO)
    DEPTH, HEADS = 2, 4

    key = jax.random.PRNGKey(0)
    ks = jax.random.split(key, 3 * M + 1)
    node_feat = [jax.random.normal(ks[i], (B, N, P), jnp.float32) for i in range(M)]
    adj = []
    for i in range(M):
        a = jax.random.uniform(ks[M + i], (B, N, N), jnp.float32)
        adj.append(0.5 * (a + jnp.transpose(a, (0, 2, 1))))
    mask = [(jax.random.uniform(ks[2 * M + i], (B, N)) > 0.2).astype(jnp.float32)
            for i in range(M)]
    missing_markers_index = jnp.array([[1.0, 0.0], [0.0, 1.0]], jnp.float32)

    params = init_params(jax.random.PRNGKey(42), P=P, D=D, M=M, K=K,
                         HID=HID, C=C, T=T, DEPTH=DEPTH)

    outs, mc_loss, ortho_loss = early_fusion_forward(
        params, node_feat, adj, mask, missing_markers_index, num_heads=HEADS)

    for o in outs:
        o.block_until_ready()
        assert o.shape == (B, C)
    mc_loss.block_until_ready()
    ortho_loss.block_until_ready()
    print("KERNEL_OK")
</pallas_src>

<mosaic_0001>
module attributes {stable_mosaic.version = 11 : i64} {
  func.func @_fused_proj_kernel(%arg0: i32, %arg1: memref<2x32x64xf32, #tpu.memory_space<vmem>>, %arg2: memref<2x64x32xf32, #tpu.memory_space<vmem>>, %arg3: memref<64x32xf32, #tpu.memory_space<vmem>>, %arg4: memref<1x32xf32, #tpu.memory_space<vmem>>, %arg5: memref<32x32xf32, #tpu.memory_space<vmem>>) attributes {dimension_semantics = [#tpu.dimension_semantics<arbitrary>], iteration_bounds = array<i64: 1>, scalar_prefetch = 0 : i64, scratch_operands = 0 : i64, tpu.core_type = #tpu.core_type<tc>, window_params = [{pipeline_mode = #tpu.pipeline_mode<synchronous>, transform_indices = @transform_0, window_bounds = array<i64: 2, 32, 64>}, {pipeline_mode = #tpu.pipeline_mode<synchronous>, transform_indices = @transform_1, window_bounds = array<i64: 2, 64, 32>}, {pipeline_mode = #tpu.pipeline_mode<synchronous>, transform_indices = @transform_2, window_bounds = array<i64: 64, 32>}, {pipeline_mode = #tpu.pipeline_mode<synchronous>, transform_indices = @transform_3, window_bounds = array<i64: 1, 32>}, {pipeline_mode = #tpu.pipeline_mode<synchronous>, transform_indices = @transform_4, window_bounds = array<i64: 32, 32>}]} {
    %c0 = arith.constant 0 : index
    %c0_0 = arith.constant 0 : index
    %c0_1 = arith.constant 0 : index
    %0 = vector.load %arg1[%c0, %c0_0, %c0_1] : memref<2x32x64xf32, #tpu.memory_space<vmem>>, vector<1x32x64xf32>
    %1 = vector.shape_cast %0 : vector<1x32x64xf32> to vector<32x64xf32>
    %c0_2 = arith.constant 0 : index
    %c0_3 = arith.constant 0 : index
    %c0_4 = arith.constant 0 : index
    %2 = vector.load %arg2[%c0_2, %c0_3, %c0_4] : memref<2x64x32xf32, #tpu.memory_space<vmem>>, vector<1x64x32xf32>
    %3 = vector.shape_cast %2 : vector<1x64x32xf32> to vector<64x32xf32>
    %4 = arith.truncf %1 : vector<32x64xf32> to vector<32x64xbf16>
    %5 = arith.truncf %3 : vector<64x32xf32> to vector<64x32xbf16>
    %cst = arith.constant dense<0.000000e+00> : vector<32x32xf32>
    %6 = tpu.matmul %4, %5, %cst {dimension_numbers = #tpu.dot_dimension_numbers<[1], [0], [0], [1], [0, 0, 1, 1], [], []>} : vector<32x64xbf16>, vector<64x32xbf16>, vector<32x32xf32> -> vector<32x32xf32>
    %7 = arith.mulf %6, %6 : vector<32x32xf32>
    %8 = arith.mulf %6, %7 : vector<32x32xf32>
    %cst_5 = arith.constant 4.471500e-02 : f32
    %9 = vector.broadcast %cst_5 : f32 to vector<32x32xf32>
    %10 = arith.mulf %9, %8 : vector<32x32xf32>
    %11 = arith.addf %6, %10 : vector<32x32xf32>
    %cst_6 = arith.constant 0.797884583 : f32
    %12 = vector.broadcast %cst_6 : f32 to vector<32x32xf32>
    %13 = arith.mulf %12, %11 : vector<32x32xf32>
    %14 = math.tanh %13 : vector<32x32xf32>
    %cst_7 = arith.constant 1.000000e+00 : f32
    %15 = vector.broadcast %cst_7 : f32 to vector<32x32xf32>
    %16 = arith.addf %15, %14 : vector<32x32xf32>
    %cst_8 = arith.constant 5.000000e-01 : f32
    %17 = vector.broadcast %cst_8 : f32 to vector<32x32xf32>
    %18 = arith.mulf %17, %16 : vector<32x32xf32>
    %19 = arith.mulf %6, %18 : vector<32x32xf32>
    %c1 = arith.constant 1 : index
    %c0_9 = arith.constant 0 : index
    %c0_10 = arith.constant 0 : index
    %20 = vector.load %arg1[%c1, %c0_9, %c0_10] : memref<2x32x64xf32, #tpu.memory_space<vmem>>, vector<1x32x64xf32>
    %21 = vector.shape_cast %20 : vector<1x32x64xf32> to vector<32x64xf32>
    %c1_11 = arith.constant 1 : index
    %c0_12 = arith.constant 0 : index
    %c0_13 = arith.constant 0 : index
    %22 = vector.load %arg2[%c1_11, %c0_12, %c0_13] : memref<2x64x32xf32, #tpu.memory_space<vmem>>, vector<1x64x32xf32>
    %23 = vector.shape_cast %22 : vector<1x64x32xf32> to vector<64x32xf32>
    %24 = arith.truncf %21 : vector<32x64xf32> to vector<32x64xbf16>
    %25 = arith.truncf %23 : vector<64x32xf32> to vector<64x32xbf16>
    %cst_14 = arith.constant dense<0.000000e+00> : vector<32x32xf32>
    %26 = tpu.matmul %24, %25, %cst_14 {dimension_numbers = #tpu.dot_dimension_numbers<[1], [0], [0], [1], [0, 0, 1, 1], [], []>} : vector<32x64xbf16>, vector<64x32xbf16>, vector<32x32xf32> -> vector<32x32xf32>
    %27 = arith.mulf %26, %26 : vector<32x32xf32>
    %28 = arith.mulf %26, %27 : vector<32x32xf32>
    %cst_15 = arith.constant 4.471500e-02 : f32
    %29 = vector.broadcast %cst_15 : f32 to vector<32x32xf32>
    %30 = arith.mulf %29, %28 : vector<32x32xf32>
    %31 = arith.addf %26, %30 : vector<32x32xf32>
    %cst_16 = arith.constant 0.797884583 : f32
    %32 = vector.broadcast %cst_16 : f32 to vector<32x32xf32>
    %33 = arith.mulf %32, %31 : vector<32x32xf32>
    %34 = math.tanh %33 : vector<32x32xf32>
    %cst_17 = arith.constant 1.000000e+00 : f32
    %35 = vector.broadcast %cst_17 : f32 to vector<32x32xf32>
    %36 = arith.addf %35, %34 : vector<32x32xf32>
    %cst_18 = arith.constant 5.000000e-01 : f32
    %37 = vector.broadcast %cst_18 : f32 to vector<32x32xf32>
    %38 = arith.mulf %37, %36 : vector<32x32xf32>
    %39 = arith.mulf %26, %38 : vector<32x32xf32>
    %40 = tpu.concatenate %19, %39 in 1 : vector<32x32xf32>, vector<32x32xf32> -> vector<32x64xf32>
    %c0_19 = arith.constant 0 : index
    %c0_20 = arith.constant 0 : index
    %41 = vector.load %arg3[%c0_19, %c0_20] : memref<64x32xf32, #tpu.memory_space<vmem>>, vector<64x32xf32>
    %42 = arith.truncf %40 : vector<32x64xf32> to vector<32x64xbf16>
    %43 = arith.truncf %41 : vector<64x32xf32> to vector<64x32xbf16>
    %cst_21 = arith.constant dense<0.000000e+00> : vector<32x32xf32>
    %44 = tpu.matmul %42, %43, %cst_21 {dimension_numbers = #tpu.dot_dimension_numbers<[1], [0], [0], [1], [0, 0, 1, 1], [], []>} : vector<32x64xbf16>, vector<64x32xbf16>, vector<32x32xf32> -> vector<32x32xf32>
    %c0_22 = arith.constant 0 : index
    %c0_23 = arith.constant 0 : index
    %45 = vector.load %arg4[%c0_22, %c0_23] : memref<1x32xf32, #tpu.memory_space<vmem>>, vector<1x32xf32>
    %46 = vector.broadcast %45 : vector<1x32xf32> to vector<32x32xf32>
    %47 = arith.addf %44, %46 : vector<32x32xf32>
    %c0_24 = arith.constant 0 : index
    %c0_25 = arith.constant 0 : index
    %48 = vector.load %arg5[%c0_24, %c0_25] : memref<32x32xf32, #tpu.memory_space<vmem>>, vector<32x32xf32>
    tpu.vector_store %arg5[%c0_24, %c0_25], %47 {strides = array<i32>} : memref<32x32xf32, #tpu.memory_space<vmem>>, vector<32x32xf32>,
    return
  }
  func.func @transform_0(%arg0: i32) -> (i32, i32, i32) {
    %c0_i32 = arith.constant 0 : i32
    %c0_i32_0 = arith.constant 0 : i32
    %c0_i32_1 = arith.constant 0 : i32
    %c0_i32_2 = arith.constant 0 : i32
    return %c0_i32, %c0_i32_0, %c0_i32_1 : i32, i32, i32
  }
  func.func @transform_1(%arg0: i32) -> (i32, i32, i32) {
    %c0_i32 = arith.constant 0 : i32
    %c0_i32_0 = arith.constant 0 : i32
    %c0_i32_1 = arith.constant 0 : i32
    %c0_i32_2 = arith.constant 0 : i32
    return %c0_i32, %c0_i32_0, %c0_i32_1 : i32, i32, i32
  }
  func.func @transform_2(%arg0: i32) -> (i32, i32) {
    %c0_i32 = arith.constant 0 : i32
    %c0_i32_0 = arith.constant 0 : i32
    %c0_i32_1 = arith.constant 0 : i32
    return %c0_i32, %c0_i32_0 : i32, i32
  }
  func.func @transform_3(%arg0: i32) -> (i32, i32) {
    %c0_i32 = arith.constant 0 : i32
    %c0_i32_0 = arith.constant 0 : i32
    %c0_i32_1 = arith.constant 0 : i32
    return %c0_i32, %c0_i32_0 : i32, i32
  }
  func.func @transform_4(%arg0: i32) -> (i32, i32) {
    %c0_i32 = arith.constant 0 : i32
    %c0_i32_0 = arith.constant 0 : i32
    %c0_i32_1 = arith.constant 0 : i32
    return %c0_i32, %c0_i32_0 : i32, i32
  }
}

</mosaic_0001>

<llo_original>
// kernel: tpu_custom_call.1
$region0: #{tpu_custom_call.1}
  #allocation0 [shape = 'u32[]', space=smem, size = 0x4, offset = 0x4, fixed_abs, tag = 'smem constant byte address 0x4 - core index']
  #allocation1 [shape = 'u32[144,128]{1,0:T(1,128)}', space=vmem, size = 0x12000, scoped, tag = 'internal scratch']
  %s0 = inlined_call_operand.vmem [shape: f32[2,32,64], index: 0, kind: input, shape index: {}]
  %s1 = inlined_call_operand.vmem [shape: f32[2,64,32], index: 1, kind: input, shape index: {}]
  %s2 = inlined_call_operand.vmem [shape: f32[64,32], index: 2, kind: input, shape index: {}]
  %s3 = inlined_call_operand.vmem [shape: f32[1,32], index: 3, kind: input, shape index: {}]
  %s4 = inlined_call_operand.hbm [shape: f32[32,32], index: 4, kind: output, shape index: {}]
  %s5 = sld [smem:[#allocation0]]
  $region26: #{tpu_custom_call.1} parent=0
    _
  %s7 = ssub.s32 1, %s5
  %s8 = scalar_select 0, %s7, %s5
  $region1: #{tpu_custom_call.1} parent=0
    #allocation2 [shape = 'u8[16384]{0}', space=vmem, size = 0x4000, scoped, tag = 'output window, operand 0, single buffered']
    #allocation3 [shape = 's32[1]{0}', space=sflag, size = 0x4, scoped, tag = 'scoped memory for tpu_custom_call.1']
    %9 = vsyncpa [#allocation3], 0
    // Predicated region
    $region2: #{tpu_custom_call.1} parent=1 // pred_check
      _
    $region3: #{tpu_custom_call.1} parent=1 // pred_check_branch
      %11 = sbr.rel (0) target = $region5
    $region4: #{tpu_custom_call.1} parent=1 // pred_region
      _
    $region5: #{tpu_custom_call.1} parent=1 // pred_fallthru
      _
    // Predicated region
    $region6: #{tpu_custom_call.1} parent=1 // pred_check
      _
    $region7: #{tpu_custom_call.1} parent=1 // pred_check_branch
      %13 = sbr.rel (0) target = $region9
    $region8: #{tpu_custom_call.1} parent=1 // pred_region
      _
    $region9: #{tpu_custom_call.1} parent=1 // pred_fallthru
      _
    // Predicated region
    $region10: #{tpu_custom_call.1} parent=1 // pred_check
      _
    $region11: #{tpu_custom_call.1} parent=1 // pred_check_branch
      %15 = sbr.rel (0) target = $region13
    $region12: #{tpu_custom_call.1} parent=1 // pred_region
      _
    $region13: #{tpu_custom_call.1} parent=1 // pred_fallthru
      _
    // Predicated region
    $region14: #{tpu_custom_call.1} parent=1 // pred_check
      _
    $region15: #{tpu_custom_call.1} parent=1 // pred_check_branch
      %17 = sbr.rel (0) target = $region17
    $region16: #{tpu_custom_call.1} parent=1 // pred_region
      _
    $region17: #{tpu_custom_call.1} parent=1 // pred_fallthru
      _
    %v19 = vld [vmem:[%s0] sm:$0xff]
    %v20 = vld [vmem:[%s0 + $0x8] sm:$0xff]
    %v21 = vld [vmem:[%s0 + $0x10] sm:$0xff]
    %v22 = vld [vmem:[%s0 + $0x18] sm:$0xff]
    %v23 = vld [vmem:[%s1] sm:$0xff]
    %v24 = vld [vmem:[%s1 + $0x8] sm:$0xff]
    %v25 = vld [vmem:[%s1 + $0x10] sm:$0xff]
    %v26 = vld [vmem:[%s1 + $0x18] sm:$0xff]
    %v27 = vld [vmem:[%s1 + $0x20] sm:$0xff]
    %v28 = vld [vmem:[%s1 + $0x28] sm:$0xff]
    %v29 = vld [vmem:[%s1 + $0x30] sm:$0xff]
    %v30 = vld [vmem:[%s1 + $0x38] sm:$0xff]
    %v31 = vpack.c.bf16 %v20, %v19
    %v32 = vpack.c.bf16 %v22, %v21
    %v33 = vpack.c.bf16 %v24, %v23
    %v34 = vpack.c.bf16 %v26, %v25
    %v35 = vpack.c.bf16 %v28, %v27
    %v36 = vpack.c.bf16 %v30, %v29
    %vm37 = vcmask 523264
    %v39 = vsel %vm37, %v31, 0
    %v42 = vsel %vm37, %v32, 0
    %44 = vmatprep.subr.bf16.mxu0 0
    %45 = vmatpush1.bf16.msra.mxu0 %v33
    %46 = vmatprep.subr.bf16.mxu0 0
    %47 = vmatpush1.bf16.msra.mxu0 %v34
    %48 = vmatprep.subr.bf16.mxu0 0
    %49 = vmatpush1.bf16.msra.mxu0 %v35
    %50 = vmatprep.subr.bf16.mxu0 0
    %51 = vmatpush1.bf16.msra.mxu0 %v36
    %52 = vmatprep.subr.bf16.mxu0 0
    %53 = vmatpush1.bf16.msra.mxu0 0
    %54 = vmatprep.subr.bf16.mxu0 0
    %55 = vmatpush1.bf16.msra.mxu0 0
    %56 = vmatprep.subr.bf16.mxu0 0
    %57 = vmatpush1.bf16.msra.mxu0 0
    %58 = vmatprep.subr.bf16.mxu0 0
    %59 = vmatpush1.bf16.msra.mxu0 0
    %60 = vmatprep.subr.bf16.mxu0 0
    %61 = vmatpush1.bf16.msra.mxu0 0
    %62 = vmatprep.subr.bf16.mxu0 0
    %63 = vmatpush1.bf16.msra.mxu0 0
    %64 = vmatprep.subr.bf16.mxu0 0
    %65 = vmatpush1.bf16.msra.mxu0 0
    %66 = vmatprep.subr.bf16.mxu0 0
    %67 = vmatpush1.bf16.msra.mxu0 0
    %68 = vmatprep.subr.bf16.mxu0 0
    %69 = vmatpush1.bf16.msra.mxu0 0
    %70 = vmatprep.subr.bf16.mxu0 0
    %71 = vmatpush1.bf16.msra.mxu0 0
    %72 = vmatprep.subr.bf16.mxu0 0
    %73 = vmatpush1.bf16.msra.mxu0 0
    %74 = vmatprep.subr.bf16.mxu0 0
    %75 = vmatpush1.bf16.msra.mxu0 0
    %76 = vmatprep.mubr.bf16.mxu0 0
    %77 = vmatmul.mubr.bf16.gmra.mrb[0].mxu0 %v39
    %v78 = vpop.f32.mrb[0].mxu0
    %v79 = vadd.f32 0.0, %v78
    %v80 = vpop.f32.mrb[0].mxu0
    %v81 = vpop.f32.mrb[0].mxu0
    %v82 = vadd.f32 0.0, %v81
    %v83 = vpop.f32.mrb[0].mxu0
    %84 = vmatprep.mubr.bf16.mxu0 0
    %85 = vmatmul.mubr.bf16.gmra.mrb[0].mxu0 %v42
    %v86 = vpop.f32.mrb[0].mxu0
    %v87 = vadd.f32 0.0, %v86
    %v88 = vpop.f32.mrb[0].mxu0
    %v89 = vpop.f32.mrb[0].mxu0
    %v90 = vadd.f32 0.0, %v89
    %v91 = vpop.f32.mrb[0].mxu0
    %92 = vdwg.mxu0
    %v93 = vmul.f32 %v79, %v79
    %v94 = vmul.f32 %v82, %v82
    %v95 = vmul.f32 %v87, %v87
    %v96 = vmul.f32 %v90, %v90
    %v97 = vmul.f32 %v79, %v93
    %v98 = vmul.f32 %v82, %v94
    %v99 = vmul.f32 %v87, %v95
    %v100 = vmul.f32 %v90, %v96
    %v101 = vmul.f32 %v97, 0.044715
    %v102 = vmul.f32 %v98, 0.044715
    %v103 = vmul.f32 %v99, 0.044715
    %v104 = vmul.f32 %v100, 0.044715
    %v105 = vadd.f32 %v79, %v101
    %v106 = vadd.f32 %v82, %v102
    %v107 = vadd.f32 %v87, %v103
    %v108 = vadd.f32 %v90, %v104
    %v109 = vmul.f32 %v105, 0.7978846
    %v110 = vmul.f32 %v106, 0.7978846
    %v111 = vmul.f32 %v107, 0.7978846
    %v112 = vmul.f32 %v108, 0.7978846
    %v113 = vtanh.pop %v109
    %v114 = vtanh.pop %v110
    %v115 = vtanh.pop %v111
    %v116 = vtanh.pop %v112
    %v117 = vadd.f32 %v113, 1.0
    %v118 = vadd.f32 %v114, 1.0
    %v119 = vadd.f32 %v115, 1.0
    %v120 = vadd.f32 %v116, 1.0
    %v121 = vmul.f32 %v117, 0.5
    %v122 = vmul.f32 %v118, 0.5
    %v123 = vmul.f32 %v119, 0.5
    %v124 = vmul.f32 %v120, 0.5
    %v125 = vmul.f32 %v79, %v121
    %v126 = vmul.f32 %v82, %v122
    %v127 = vmul.f32 %v87, %v123
    %v128 = vmul.f32 %v90, %v124
    %s129 = scalar_lea.vmem %s0, 32
    %v130 = vld [vmem:[%s129] sm:$0xff]
    %v131 = vld [vmem:[%s129 + $0x8] sm:$0xff]
    %v132 = vld [vmem:[%s129 + $0x10] sm:$0xff]
    %v133 = vld [vmem:[%s129 + $0x18] sm:$0xff]
    %s134 = scalar_lea.vmem %s1, 64
    %v135 = vld [vmem:[%s134] sm:$0xff]
    %v136 = vld [vmem:[%s134 + $0x8] sm:$0xff]
    %v137 = vld [vmem:[%s134 + $0x10] sm:$0xff]
    %v138 = vld [vmem:[%s134 + $0x18] sm:$0xff]
    %v139 = vld [vmem:[%s134 + $0x20] sm:$0xff]
    %v140 = vld [vmem:[%s134 + $0x28] sm:$0xff]
    %v141 = vld [vmem:[%s134 + $0x30] sm:$0xff]
    %v142 = vld [vmem:[%s134 + $0x38] sm:$0xff]
    %v143 = vpack.c.bf16 %v131, %v130
    %v144 = vpack.c.bf16 %v133, %v132
    %v145 = vpack.c.bf16 %v136, %v135
    %v146 = vpack.c.bf16 %v138, %v137
    %v147 = vpack.c.bf16 %v140, %v139
    %v148 = vpack.c.bf16 %v142, %v141
    %v150 = vsel %vm37, %v143, 0
    %v153 = vsel %vm37, %v144, 0
    %155 = vmatprep.subr.bf16.mxu0 0
    %156 = vmatpush1.bf16.msra.mxu0 %v145
    %157 = vmatprep.subr.bf16.mxu0 0
    %158 = vmatpush1.bf16.msra.mxu0 %v146
    %159 = vmatprep.subr.bf16.mxu0 0
    %160 = vmatpush1.bf16.msra.mxu0 %v147
    %161 = vmatprep.subr.bf16.mxu0 0
    %162 = vmatpush1.bf16.msra.mxu0 %v148
    %163 = vmatprep.subr.bf16.mxu0 0
    %164 = vmatpush1.bf16.msra.mxu0 0
    %165 = vmatprep.subr.bf16.mxu0 0
    %166 = vmatpush1.bf16.msra.mxu0 0
    %167 = vmatprep.subr.bf16.mxu0 0
    %168 = vmatpush1.bf16.msra.mxu0 0
    %169 = vmatprep.subr.bf16.mxu0 0
    %170 = vmatpush1.bf16.msra.mxu0 0
    %171 = vmatprep.subr.bf16.mxu0 0
    %172 = vmatpush1.bf16.msra.mxu0 0
    %173 = vmatprep.subr.bf16.mxu0 0
    %174 = vmatpush1.bf16.msra.mxu0 0
    %175 = vmatprep.subr.bf16.mxu0 0
    %176 = vmatpush1.bf16.msra.mxu0 0
    %177 = vmatprep.subr.bf16.mxu0 0
    %178 = vmatpush1.bf16.msra.mxu0 0
    %179 = vmatprep.subr.bf16.mxu0 0
    %180 = vmatpush1.bf16.msra.mxu0 0
    %181 = vmatprep.subr.bf16.mxu0 0
    %182 = vmatpush1.bf16.msra.mxu0 0
    %183 = vmatprep.subr.bf16.mxu0 0
    %184 = vmatpush1.bf16.msra.mxu0 0
    %185 = vmatprep.subr.bf16.mxu0 0
    %186 = vmatpush1.bf16.msra.mxu0 0
    %187 = vmatprep.mubr.bf16.mxu0 0
    %188 = vmatmul.mubr.bf16.gmra.mrb[0].mxu0 %v150
    %v189 = vpop.f32.mrb[0].mxu0
    %v190 = vadd.f32 0.0, %v189
    %v191 = vpop.f32.mrb[0].mxu0
    %v192 = vpop.f32.mrb[0].mxu0
    %v193 = vadd.f32 0.0, %v192
    %v194 = vpop.f32.mrb[0].mxu0
    %195 = vmatprep.mubr.bf16.mxu0 0
    %196 = vmatmul.mubr.bf16.gmra.mrb[0].mxu0 %v153
    %v197 = vpop.f32.mrb[0].mxu0
    %v198 = vadd.f32 0.0, %v197
    %v199 = vpop.f32.mrb[0].mxu0
    %v200 = vpop.f32.mrb[0].mxu0
    %v201 = vadd.f32 0.0, %v200
    %v202 = vpop.f32.mrb[0].mxu0
    %203 = vdwg.mxu0
    %v204 = vmul.f32 %v190, %v190
    %v205 = vmul.f32 %v193, %v193
    %v206 = vmul.f32 %v198, %v198
    %v207 = vmul.f32 %v201, %v201
    %v208 = vmul.f32 %v190, %v204
    %v209 = vmul.f32 %v193, %v205
    %v210 = vmul.f32 %v198, %v206
    %v211 = vmul.f32 %v201, %v207
    %v212 = vmul.f32 %v208, 0.044715
    %v213 = vmul.f32 %v209, 0.044715
    %v214 = vmul.f32 %v210, 0.044715
    %v215 = vmul.f32 %v211, 0.044715
    %v216 = vadd.f32 %v190, %v212
    %v217 = vadd.f32 %v193, %v213
    %v218 = vadd.f32 %v198, %v214
    %v219 = vadd.f32 %v201, %v215
    %v220 = vmul.f32 %v216, 0.7978846
    %v221 = vmul.f32 %v217, 0.7978846
    %v222 = vmul.f32 %v218, 0.7978846
    %v223 = vmul.f32 %v219, 0.7978846
    %v224 = vtanh.pop %v220
    %v225 = vtanh.pop %v221
    %v226 = vtanh.pop %v222
    %v227 = vtanh.pop %v223
    %v228 = vadd.f32 %v224, 1.0
    %v229 = vadd.f32 %v225, 1.0
    %v230 = vadd.f32 %v226, 1.0
    %v231 = vadd.f32 %v227, 1.0
    %v232 = vmul.f32 %v228, 0.5
    %v233 = vmul.f32 %v229, 0.5
    %v234 = vmul.f32 %v230, 0.5
    %v235 = vmul.f32 %v231, 0.5
    %v236 = vmul.f32 %v190, %v232
    %v237 = vmul.f32 %v193, %v233
    %v238 = vmul.f32 %v198, %v234
    %v239 = vmul.f32 %v201, %v235
    %244 = vrot.lane.b32.xlu0 %v236, 32
    %v245 = vpop.permute.xlu0 %244
    %246 = vrot.lane.b32.xlu0 %v237, 32
    %v247 = vpop.permute.xlu0 %246
    %248 = vrot.lane.b32.xlu0 %v238, 32
    %v249 = vpop.permute.xlu0 %248
    %250 = vrot.lane.b32.xlu0 %v239, 32
    %v251 = vpop.permute.xlu0 %250
    %vm256 = vcmask 261120
    %v257 = vsel %vm256, %v125, %v245
    %v258 = vsel %vm256, %v126, %v247
    %v259 = vsel %vm256, %v127, %v249
    %v260 = vsel %vm256, %v128, %v251
    %v261 = vld [vmem:[%s2] sm:$0xff]
    %v262 = vld [vmem:[%s2 + $0x8] sm:$0xff]
    %v263 = vld [vmem:[%s2 + $0x10] sm:$0xff]
    %v264 = vld [vmem:[%s2 + $0x18] sm:$0xff]
    %v265 = vld [vmem:[%s2 + $0x20] sm:$0xff]
    %v266 = vld [vmem:[%s2 + $0x28] sm:$0xff]
    %v267 = vld [vmem:[%s2 + $0x30] sm:$0xff]
    %v268 = vld [vmem:[%s2 + $0x38] sm:$0xff]
    %v269 = vpack.c.bf16 %v258, %v257
    %v270 = vpack.c.bf16 %v260, %v259
    %v271 = vpack.c.bf16 %v262, %v261
    %v272 = vpack.c.bf16 %v264, %v263
    %v273 = vpack.c.bf16 %v266, %v265
    %v274 = vpack.c.bf16 %v268, %v267
    %v275 = vld [vmem:[%s3] sm:$0x1]
    %v277 = vlaneseq
    %v278 = vshrl.u32 %v277, 7
    %v279 = vsub.s32 0, %v278
    %v280 = vrot.slane %v275, %v279
    %v283 = vsel %vm37, %v269, 0
    %v286 = vsel %vm37, %v270, 0
    %288 = vmatprep.subr.bf16.mxu0 0
    %289 = vmatpush1.bf16.msra.mxu0 %v271
    %290 = vmatprep.subr.bf16.mxu0 0
    %291 = vmatpush1.bf16.msra.mxu0 %v272
    %292 = vmatprep.subr.bf16.mxu0 0
    %293 = vmatpush1.bf16.msra.mxu0 %v273
    %294 = vmatprep.subr.bf16.mxu0 0
    %295 = vmatpush1.bf16.msra.mxu0 %v274
    %296 = vmatprep.subr.bf16.mxu0 0
    %297 = vmatpush1.bf16.msra.mxu0 0
    %298 = vmatprep.subr.bf16.mxu0 0
    %299 = vmatpush1.bf16.msra.mxu0 0
    %300 = vmatprep.subr.bf16.mxu0 0
    %301 = vmatpush1.bf16.msra.mxu0 0
    %302 = vmatprep.subr.bf16.mxu0 0
    %303 = vmatpush1.bf16.msra.mxu0 0
    %304 = vmatprep.subr.bf16.mxu0 0
    %305 = vmatpush1.bf16.msra.mxu0 0
    %306 = vmatprep.subr.bf16.mxu0 0
    %307 = vmatpush1.bf16.msra.mxu0 0
    %308 = vmatprep.subr.bf16.mxu0 0
    %309 = vmatpush1.bf16.msra.mxu0 0
    %310 = vmatprep.subr.bf16.mxu0 0
    %311 = vmatpush1.bf16.msra.mxu0 0
    %312 = vmatprep.subr.bf16.mxu0 0
    %313 = vmatpush1.bf16.msra.mxu0 0
    %314 = vmatprep.subr.bf16.mxu0 0
    %315 = vmatpush1.bf16.msra.mxu0 0
    %316 = vmatprep.subr.bf16.mxu0 0
    %317 = vmatpush1.bf16.msra.mxu0 0
    %318 = vmatprep.subr.bf16.mxu0 0
    %319 = vmatpush1.bf16.msra.mxu0 0
    %320 = vmatprep.mubr.bf16.mxu0 0
    %321 = vmatmul.mubr.bf16.gmra.mrb[0].mxu0 %v283
    %v322 = vpop.f32.mrb[0].mxu0
    %v323 = vadd.f32 %v280, %v322
    %v324 = vpop.f32.mrb[0].mxu0
    %v325 = vpop.f32.mrb[0].mxu0
    %v326 = vadd.f32 %v280, %v325
    %v327 = vpop.f32.mrb[0].mxu0
    %328 = vmatprep.mubr.bf16.mxu0 0
    %329 = vmatmul.mubr.bf16.gmra.mrb[0].mxu0 %v286
    %v330 = vpop.f32.mrb[0].mxu0
    %v331 = vadd.f32 %v280, %v330
    %v332 = vpop.f32.mrb[0].mxu0
    %v333 = vpop.f32.mrb[0].mxu0
    %v334 = vadd.f32 %v280, %v333
    %v335 = vpop.f32.mrb[0].mxu0
    %336 = vdwg.mxu0
    %337 = vst.msk [vmem:[#allocation2] sm:$0xff] %vm256, %v323
    %338 = vst.msk [vmem:[#allocation2 + $0x8] sm:$0xff] %vm256, %v326
    %339 = vst.msk [vmem:[#allocation2 + $0x10] sm:$0xff] %vm256, %v331
    %340 = vst.msk [vmem:[#allocation2 + $0x18] sm:$0xff] %vm256, %v334
    // Predicated region
    $region18: #{tpu_custom_call.1} parent=1 // pred_check
      _
    $region19: #{tpu_custom_call.1} parent=1 // pred_check_branch
      %342 = sbr.rel (0) target = $region21
    $region20: #{tpu_custom_call.1} parent=1 // pred_region
      %s344 = ssub.s32 512, 512
      %345 = vsyncadd [#allocation3], %s344
      %s346 = sshll.u32 [#allocation2], 4
      %s347 = int_to_ptr.vmem [resolvable:$true] %s346
      %352 = dma.vmem_to_hbm [thread:$0]  %s347, 512, %s4, [#allocation3], 128, 128, 8
    $region21: #{tpu_custom_call.1} parent=1 // pred_fallthru
      _
    // Predicated region
    $region22: #{tpu_custom_call.1} parent=1 // pred_check
      _
    $region23: #{tpu_custom_call.1} parent=1 // pred_check_branch
      %354 = sbr.rel (0) target = $region25
    $region24: #{tpu_custom_call.1} parent=1 // pred_region
      %355 = dma.done [#allocation3], 512
    $region25: #{tpu_custom_call.1} parent=1 // pred_fallthru
      _
    %356 = vsyncpa [#allocation3], 1

</llo_original>
